<compile_context>
chip_gen: v7x
topology: tpu7x:2x2x1
jax: 0.10.0
libtpu: 0.0.40
codegen_flags: <defaults>
</compile_context>

<pallas_src>
import jax
import jax.numpy as jnp
from jax.experimental import pallas as pl
from jax.experimental.pallas import tpu as pltpu

_LANE = 128
_EPS = 1e-6


def _l2norm_kernel(x_ref, o_ref):
    # x_ref / o_ref: (1, C, TILE_S, 128) or (1, C, TILE_HW) VMEM tiles.
    x = x_ref[...]
    xf = x if x.dtype == jnp.float32 else x.astype(jnp.float32)
    sumsq = jnp.sum(xf * xf, axis=1, keepdims=True)      # reduce over channels
    inv = jax.lax.rsqrt(sumsq + jnp.float32(_EPS))       # EUP rsqrt, no divide
    o_ref[...] = (x * inv.astype(x.dtype)).astype(o_ref.dtype)


def _sublane_multiple(itemsize):
    # Native sublane packing: 8 rows of 32-bit; sub-32-bit dtypes pack more.
    return max(8, (8 * 4) // itemsize)


def _target_block_bytes():
    # Larger blocks on v7x amortize the fixed per-grid-step pipeline overhead
    # against its ~2.3x faster HBM; 4 MiB is already near the knee on v5e/v6e.
    try:
        if "7" in str(getattr(pltpu.get_tpu_info(), "chip_version", "")).lower():
            return 8 * 1024 * 1024
    except Exception:
        pass
    return 4 * 1024 * 1024


def _vmem_limit_bytes(block_bytes):
    try:
        cap = pltpu.get_tpu_info().vmem_capacity_bytes
    except Exception:
        cap = 64 << 20                       # v7x per-TC capacity (smallest)
    need = 4 * block_bytes + (1 << 20)       # double-buffered input + output
    return int(min(max(need, 32 << 20), int(cap * 0.75)))


def _pick_tile(extent, row_bytes, align, batch, target):
    """Tile length along one axis: ~`target` bytes per block, a multiple of
    `align` (or the full extent), and at least 2 total grid steps so both v7x
    TensorCores get work."""
    tile = max(1, target // row_bytes)
    if tile >= extent:
        tile = extent
    else:
        tile = min(extent, max(align, (tile // align) * align))
    while batch * pl.cdiv(extent, tile) < 2 and tile > align:
        tile = max(align, ((tile // 2) // align) * align)
    return tile


def feature_l2_norm(feature):
    """feature: [B, C, H, W] (NCHW). Returns same shape/dtype, L2-normalized
    over the channel dim (matches FeatureL2Norm.forward)."""
    B, C, H, W = feature.shape
    HW = H * W
    dtype = feature.dtype
    itemsize = jnp.dtype(dtype).itemsize
    sub = _sublane_multiple(itemsize)
    target = _target_block_bytes()

    cost = pl.CostEstimate(
        flops=3 * B * C * HW,           # square + reduce-add + final multiply
        transcendentals=B * HW,         # one rsqrt per spatial location
        bytes_accessed=2 * B * C * HW * itemsize,
    )

    def run(x, block, grid, index_map, block_bytes):
        return pl.pallas_call(
            _l2norm_kernel,
            out_shape=jax.ShapeDtypeStruct(x.shape, dtype),
            grid_spec=pltpu.PrefetchScalarGridSpec(
                num_scalar_prefetch=0,
                grid=grid,
                in_specs=[pl.BlockSpec(block, index_map)],
                out_specs=pl.BlockSpec(block, index_map),
            ),
            compiler_params=pltpu.CompilerParams(
                dimension_semantics=("parallel", "parallel"),
                vmem_limit_bytes=_vmem_limit_bytes(block_bytes),
            ),
            cost_estimate=cost,
        )(x)

    if HW % _LANE == 0:
        # Main path: lane-dense [B, C, S, 128] view; pure reshapes, no copies,
        # ragged spatial grid handled by Pallas (no pad, no output slice).
        S = HW // _LANE
        tile_s = _pick_tile(S, C * _LANE * itemsize, sub, B, target)
        x = feature.reshape(B, C, S, _LANE)
        out = run(x, (1, C, tile_s, _LANE), (B, pl.cdiv(S, tile_s)),
                  lambda b, s: (b, 0, s, 0), C * tile_s * _LANE * itemsize)
        return out.reshape(B, C, H, W)

    if C % sub == 0:
        # H*W not lane-aligned but C is sublane-aligned: keep [B, C, HW] and
        # reduce over the sublane axis (XLU, hidden under DMA). Still no pad;
        # the ragged last lane-block is handled by Pallas.
        tile_hw = _pick_tile(HW, C * itemsize, _LANE, B, target)
        x = feature.reshape(B, C, HW)
        out = run(x, (1, C, tile_hw), (B, pl.cdiv(HW, tile_hw)),
                  lambda b, s: (b, 0, s), C * tile_hw * itemsize)
        return out.reshape(B, C, H, W)

    # Rare fallback (neither axis aligned): lane-pad the flattened spatial axis
    # to a 128 multiple and slice it back. Costs one extra HBM pass each way.
    S = pl.cdiv(HW, _LANE)
    hw_pad = S * _LANE
    x = jnp.pad(feature.reshape(B, C, HW), ((0, 0), (0, 0), (0, hw_pad - HW)))
    x = x.reshape(B, C, S, _LANE)
    tile_s = _pick_tile(S, C * _LANE * itemsize, sub, B, target)
    out = run(x, (1, C, tile_s, _LANE), (B, pl.cdiv(S, tile_s)),
              lambda b, s: (b, 0, s, 0), C * tile_s * _LANE * itemsize)
    return out.reshape(B, C, hw_pad)[:, :, :HW].reshape(B, C, H, W)


if __name__ == "__main__":
    key = jax.random.PRNGKey(0)
    B, C, H, W = 2, 4, 16, 16
    feature = jax.random.normal(key, (B, C, H, W), dtype=jnp.float32)

    result = feature_l2_norm(feature)
    jax.block_until_ready(result)

    # Reference check (plain JAX, mirrors the PyTorch forward).
    norm = jnp.sqrt(jnp.sum(feature ** 2, axis=1, keepdims=True) + 1e-6)
    ref = feature / norm
    assert result.shape == feature.shape and result.dtype == feature.dtype
    assert jnp.allclose(result, ref, atol=1e-5, rtol=1e-5), "mismatch vs reference"

    print("KERNEL_OK")
</pallas_src>

<mosaic_0001>
module attributes {stable_mosaic.version = 11 : i64} {
  func.func @_l2norm_kernel(%arg0: i32, %arg1: i32, %arg2: memref<1x4x2x128xf32, #tpu.memory_space<vmem>>, %arg3: memref<1x4x2x128xf32, #tpu.memory_space<vmem>>) attributes {dimension_semantics = [#tpu.dimension_semantics<parallel>, #tpu.dimension_semantics<parallel>], iteration_bounds = array<i64: 2, 1>, scalar_prefetch = 0 : i64, scratch_operands = 0 : i64, tpu.core_type = #tpu.core_type<tc>, window_params = [{transform_indices = @transform_0, window_bounds = array<i64: 1, 4, 2, 128>}, {transform_indices = @transform_1, window_bounds = array<i64: 1, 4, 2, 128>}]} {
    %c0 = arith.constant 0 : index
    %c0_0 = arith.constant 0 : index
    %c0_1 = arith.constant 0 : index
    %c0_2 = arith.constant 0 : index
    %0 = vector.load %arg2[%c0, %c0_0, %c0_1, %c0_2] : memref<1x4x2x128xf32, #tpu.memory_space<vmem>>, vector<1x4x2x128xf32>
    %1 = arith.mulf %0, %0 : vector<1x4x2x128xf32>
    %cst = arith.constant dense<0.000000e+00> : vector<1x2x128xf32>
    %2 = vector.multi_reduction <add>, %1, %cst [1] : vector<1x4x2x128xf32> to vector<1x2x128xf32>
    %3 = vector.shape_cast %2 : vector<1x2x128xf32> to vector<1x1x2x128xf32>
    %cst_3 = arith.constant 9.99999997E-7 : f32
    %4 = vector.broadcast %cst_3 : f32 to vector<1x1x2x128xf32>
    %5 = arith.addf %3, %4 : vector<1x1x2x128xf32>
    %6 = math.rsqrt %5 : vector<1x1x2x128xf32>
    %7 = vector.broadcast %6 : vector<1x1x2x128xf32> to vector<1x4x2x128xf32>
    %8 = arith.mulf %0, %7 : vector<1x4x2x128xf32>
    %c0_4 = arith.constant 0 : index
    %c0_5 = arith.constant 0 : index
    %c0_6 = arith.constant 0 : index
    %c0_7 = arith.constant 0 : index
    %9 = vector.load %arg3[%c0_4, %c0_5, %c0_6, %c0_7] : memref<1x4x2x128xf32, #tpu.memory_space<vmem>>, vector<1x4x2x128xf32>
    tpu.vector_store %arg3[%c0_4, %c0_5, %c0_6, %c0_7], %8 {strides = array<i32>} : memref<1x4x2x128xf32, #tpu.memory_space<vmem>>, vector<1x4x2x128xf32>,
    return
  }
  func.func @transform_0(%arg0: i32, %arg1: i32) -> (i32, i32, i32, i32) {
    %c0_i32 = arith.constant 0 : i32
    %c0_i32_0 = arith.constant 0 : i32
    %c0_i32_1 = arith.constant 0 : i32
    return %arg0, %c0_i32, %arg1, %c0_i32_0 : i32, i32, i32, i32
  }
  func.func @transform_1(%arg0: i32, %arg1: i32) -> (i32, i32, i32, i32) {
    %c0_i32 = arith.constant 0 : i32
    %c0_i32_0 = arith.constant 0 : i32
    %c0_i32_1 = arith.constant 0 : i32
    return %arg0, %c0_i32, %arg1, %c0_i32_0 : i32, i32, i32, i32
  }
}

</mosaic_0001>

<llo_original>
// kernel: tpu_custom_call.1
$region0: #{tpu_custom_call.1}
  #allocation0 [shape = 'u32[]', space=smem, size = 0x4, offset = 0x4, fixed_abs, tag = 'smem constant byte address 0x4 - core index']
  #allocation1 [shape = 'u32[144,128]{1,0:T(1,128)}', space=vmem, size = 0x12000, scoped, tag = 'internal scratch']
  %s0 = inlined_call_operand.hbm [shape: f32[2,4,2,128], index: 0, kind: input, shape index: {}]
  %s1 = inlined_call_operand.hbm [shape: f32[2,4,2,128], index: 1, kind: output, shape index: {}]
  %s2 = sld [smem:[#allocation0]]
  $region41: #{tpu_custom_call.1} parent=0
    _
  %s4 = ssub.s32 1, %s2
  %s5 = scalar_select 0, %s4, %s2
  $region1: #{tpu_custom_call.1} parent=0
    #allocation2 [shape = 'u8[8192]{0}', space=vmem, size = 0x2000, scoped, tag = 'input window, operand 0']
    #allocation3 [shape = 's32[2]{0}', space=sflag, size = 0x8, scoped, tag = 'scoped memory for tpu_custom_call.1']
    #allocation4 [shape = 's32[2]{0}', space=sflag, size = 0x8, scoped, tag = 'scoped memory for tpu_custom_call.1']
    #allocation5 [shape = 'u8[8192]{0}', space=vmem, size = 0x2000, scoped, tag = 'output window, operand 0']
    %6 = vsyncpa [#allocation3], 0
    %s7 = scalar_lea.sflag [#allocation3], 1
    %8 = vsyncpa %s7, 0
    %9 = vsyncpa [#allocation4], 0
    %s10 = scalar_lea.sflag [#allocation4], 1
    %11 = vsyncpa %s10, 0
    loop: start=0, step=1, limit=4
    $region2: #{tpu_custom_call.1} parent=1 // loop_pre_header
      _
    $region3: #{tpu_custom_call.1} parent=1 // loop_header
      %s13 = sphi 0, %s17
      %p14 = scmp.ge.s32.totalorder %s13, 4
      %s20 = sphi 0, %s32
      %s21 = sphi 0, %s28
      %s22 = sphi 0, %s20
      %s23 = sphi 0, %s21
      %s24 = sphi 0, %s22
      %s25 = sphi 0, %s23
      %s37 = sphi 0, %s39
      %s40 = sphi 0, %s37
      %s41 = sphi 0, %s40
      %s57 = sphi 0, %s41
      %s65 = sphi 0, %s67
      %s68 = sphi 0, %s65
      %s69 = sphi 0, %s68
      %s85 = sphi 0, %s69
    $region4: #{tpu_custom_call.1} parent=1 // loop_header_branch
      %16 = sbr.rel (%p14) target = $region8
    $region5: #{tpu_custom_call.1} parent=1 // loop_body
      %s18 = ssub.s32 %s13, 1
      %s19 = ssub.s32 %s13, 2
      %s26 = sadd.s32 1, %s21
      %p27 = scmp.ge.s32.totalorder %s26, 1
      %s28 = scalar_select %p27, 0, %s26
      %s29 = sadd.s32 1, %s20
      %s30 = scalar_select %p27, %s29, %s20
      %p31 = scmp.ge.s32.totalorder %s30, 2
      %s32 = scalar_select %p31, 0, %s30
      %s33 = ssub.s32 %s20, %s32
      %s34 = ssub.s32 %s21, %s28
      %s35 = sor.u32 %s33, %s34
      %p36 = scmp.eq.s32.totalorder %s35, 0
      %s38 = sadd.s32 %s37, 1
      %s39 = scalar_select %p36, %s37, %s38
      %p42 = pneg %p36
      %p43 = scmp.eq.s32.totalorder %s13, 1
      %p44 = por %p42, %p43
      %p45 = scmp.ne.s32.totalorder %s37, %s40
      %p46 = scmp.eq.s32.totalorder %s13, 0
      %p47 = por %p45, %p46
      %p48 = scmp.ne.s32.totalorder %s37, %s40
      %p49 = scmp.eq.s32.totalorder %s18, 1
      %p50 = por %p48, %p49
      %p51 = scmp.ne.s32.totalorder %s40, %s41
      %p52 = scmp.eq.s32.totalorder %s18, 0
      %p53 = por %p51, %p52
      %p54 = scmp.ne.s32.totalorder %s40, %s41
      %p55 = scmp.eq.s32.totalorder %s19, 1
      %p56 = por %p54, %p55
      %p58 = scmp.ne.s32.totalorder %s41, %s57
      %p59 = scmp.eq.s32.totalorder %s19, 0
      %p60 = por %p58, %p59
      %s61 = ssub.s32 %s20, %s32
      %s62 = ssub.s32 %s21, %s28
      %s63 = sor.u32 %s61, %s62
      %p64 = scmp.eq.s32.totalorder %s63, 0
      %s66 = sadd.s32 %s65, 1
      %s67 = scalar_select %p64, %s65, %s66
      %p70 = pneg %p64
      %p71 = scmp.eq.s32.totalorder %s13, 1
      %p72 = por %p70, %p71
      %p73 = scmp.ne.s32.totalorder %s65, %s68
      %p74 = scmp.eq.s32.totalorder %s13, 0
      %p75 = por %p73, %p74
      %p76 = scmp.ne.s32.totalorder %s65, %s68
      %p77 = scmp.eq.s32.totalorder %s18, 1
      %p78 = por %p76, %p77
      %p79 = scmp.ne.s32.totalorder %s68, %s69
      %p80 = scmp.eq.s32.totalorder %s18, 0
      %p81 = por %p79, %p80
      %p82 = scmp.ne.s32.totalorder %s68, %s69
      %p83 = scmp.eq.s32.totalorder %s19, 1
      %p84 = por %p82, %p83
      %p86 = scmp.ne.s32.totalorder %s69, %s85
      %p87 = scmp.eq.s32.totalorder %s19, 0
      %p88 = por %p86, %p87
      %p89 = scmp.le.s32.totalorder 1, %s13
      %p90 = scmp.lt.s32.totalorder %s13, 3
      %p91 = pnand %p89, %p90
      %p92 = pneg %p91
      // Predicated region
      $region9: #{tpu_custom_call.1} parent=5 // pred_check
        _
      $region10: #{tpu_custom_call.1} parent=5 // pred_check_branch
        %94 = sbr.rel (%p91) target = $region12
      $region11: #{tpu_custom_call.1} parent=5 // pred_region
        %s95 = ssub.s32 %s13, 1
      $region12: #{tpu_custom_call.1} parent=5 // pred_fallthru
        _
      %p96 = scmp.lt.s32.totalorder %s13, 2
      // Predicated region
      $region13: #{tpu_custom_call.1} parent=5 // pred_check
        %p97 = pneg %p96
      $region14: #{tpu_custom_call.1} parent=5 // pred_check_branch
        %99 = sbr.rel (%p97) target = $region16
      $region15: #{tpu_custom_call.1} parent=5 // pred_region
        // Predicated region
        $region17: #{tpu_custom_call.1} parent=15 // pred_check
          %p100 = pneg %p47
        $region18: #{tpu_custom_call.1} parent=15 // pred_check_branch
          %102 = sbr.rel (%p100) target = $region20
        $region19: #{tpu_custom_call.1} parent=15 // pred_region
          %s103 = sand.u32 %s37, 1
          %s104 = scalar_lea.sflag [#allocation3], %s103
          %s105 = sand.u32 %s37, 1
          %s106 = smul.addr %s105, 8
          %s107 = scalar_lea.vmem [#allocation2], %s106
          %s109 = ssub.s32 128, 128
          %110 = vsyncadd %s104, %s109
          %s111 = smul.addr %s20, 4
          %s112 = sadd.s32 %s21, %s111
          %s113 = smul.addr %s112, 32
          %s114 = scalar_lea.hbm %s0, %s113
          %s115 = sshll.u32 %s107, 4
          %s116 = int_to_ptr.vmem [resolvable:$true] %s115
          %121 = dma.hbm_to_vmem [thread:$0]  %s114, 128, %s116, %s104, 32, 32, 2
        $region20: #{tpu_custom_call.1} parent=15 // pred_fallthru
          _
      $region16: #{tpu_custom_call.1} parent=5 // pred_fallthru
        _
      %p122 = scmp.le.s32.totalorder 1, %s13
      %p123 = scmp.lt.s32.totalorder %s13, 3
      %p124 = pnand %p122, %p123
      %p125 = pneg %p124
      // Predicated region
      $region21: #{tpu_custom_call.1} parent=5 // pred_check
        _
      $region22: #{tpu_custom_call.1} parent=5 // pred_check_branch
        %127 = sbr.rel (%p124) target = $region24
      $region23: #{tpu_custom_call.1} parent=5 // pred_region
        %s128 = ssub.s32 %s13, 1
        %s129 = sand.u32 %s40, 1
        %s130 = scalar_lea.sflag [#allocation3], %s129
        %s131 = sand.u32 %s40, 1
        %s132 = smul.addr %s131, 8
        %s133 = scalar_lea.vmem [#allocation2], %s132
        // Predicated region
        $region25: #{tpu_custom_call.1} parent=23 // pred_check
          %p134 = pneg %p53
        $region26: #{tpu_custom_call.1} parent=23 // pred_check_branch
          %136 = sbr.rel (%p134) target = $region28
        $region27: #{tpu_custom_call.1} parent=23 // pred_region
          %137 = dma.done %s130, 128
        $region28: #{tpu_custom_call.1} parent=23 // pred_fallthru
          _
        %s138 = sand.u32 %s40, 1
        %s139 = scalar_lea.sflag [#allocation3], %s138
        %s140 = sand.u32 %s40, 1
        %s141 = smul.addr %s140, 8
        %s142 = scalar_lea.vmem [#allocation2], %s141
        %p143 = pneg %p53
        %p144 = pneg %p50
        %p145 = pneg %p81
        %p146 = pneg %p78
        %s147 = sand.u32 %s68, 1
        %s148 = scalar_lea.sflag [#allocation4], %s147
        %s149 = sand.u32 %s68, 1
        %s150 = smul.addr %s149, 8
        %s151 = scalar_lea.vmem [#allocation5], %s150
        %v152 = vld [vmem:[%s133] sm:$0x3]
        %v153 = vld [vmem:[%s133 + $0x2] sm:$0x3]
        %v154 = vld [vmem:[%s133 + $0x4] sm:$0x3]
        %v155 = vld [vmem:[%s133 + $0x6] sm:$0x3]
        %v156 = vmul.f32 %v152, %v152
        %v157 = vmul.f32 %v153, %v153
        %v158 = vmul.f32 %v154, %v154
        %v159 = vmul.f32 %v155, %v155
        %vm160 = vcmask 1041408
        %v161 = vsel %vm160, %v156, 0.0
        %v162 = vsel %vm160, %v157, 0.0
        %v163 = vadd.f32 %v161, %v162
        %v164 = vsel %vm160, %v158, 0.0
        %v165 = vadd.f32 %v163, %v164
        %v166 = vsel %vm160, %v159, 0.0
        %v167 = vadd.f32 %v165, %v166
        %v168 = vadd.f32 %v167, 1e-06
        %v169 = vrsqrt.pop %v168
        %v170 = vmul.f32 %v152, %v169
        %v171 = vmul.f32 %v153, %v169
        %v172 = vmul.f32 %v154, %v169
        %v173 = vmul.f32 %v155, %v169
        %174 = vst [vmem:[%s151] sm:$0x3] %v170
        %175 = vst [vmem:[%s151 + $0x2] sm:$0x3] %v171
        %176 = vst [vmem:[%s151 + $0x4] sm:$0x3] %v172
        %177 = vst [vmem:[%s151 + $0x6] sm:$0x3] %v173
        %s178 = sand.u32 %s68, 1
        %s179 = scalar_lea.sflag [#allocation4], %s178
        %s180 = sand.u32 %s68, 1
        %s181 = smul.addr %s180, 8
        %s182 = scalar_lea.vmem [#allocation5], %s181
        // Predicated region
        $region29: #{tpu_custom_call.1} parent=23 // pred_check
          %p183 = pneg %p78
        $region30: #{tpu_custom_call.1} parent=23 // pred_check_branch
          %185 = sbr.rel (%p183) target = $region32
        $region31: #{tpu_custom_call.1} parent=23 // pred_region
          %s187 = ssub.s32 128, 128
          %188 = vsyncadd %s179, %s187
          %s189 = smul.addr %s22, 4
          %s190 = sadd.s32 %s23, %s189
          %s191 = smul.addr %s190, 32
          %s192 = scalar_lea.hbm %s1, %s191
          %s193 = sshll.u32 %s182, 4
          %s194 = int_to_ptr.vmem [resolvable:$true] %s193
          %199 = dma.vmem_to_hbm [thread:$0]  %s194, 128, %s192, %s179, 32, 32, 2
        $region32: #{tpu_custom_call.1} parent=23 // pred_fallthru
          _
      $region24: #{tpu_custom_call.1} parent=5 // pred_fallthru
        _
      %p200 = scmp.le.s32.totalorder 2, %s13
      // Predicated region
      $region33: #{tpu_custom_call.1} parent=5 // pred_check
        %p201 = pneg %p200
      $region34: #{tpu_custom_call.1} parent=5 // pred_check_branch
        %203 = sbr.rel (%p201) target = $region36
      $region35: #{tpu_custom_call.1} parent=5 // pred_region
        %s204 = ssub.s32 %s13, 2
        // Predicated region
        $region37: #{tpu_custom_call.1} parent=35 // pred_check
          %p205 = pneg %p84
        $region38: #{tpu_custom_call.1} parent=35 // pred_check_branch
          %207 = sbr.rel (%p205) target = $region40
        $region39: #{tpu_custom_call.1} parent=35 // pred_region
          %s208 = sand.u32 %s69, 1
          %s209 = scalar_lea.sflag [#allocation4], %s208
          %s210 = sand.u32 %s69, 1
          %s211 = smul.addr %s210, 8
          %s212 = scalar_lea.vmem [#allocation5], %s211
          %213 = dma.done %s209, 128
        $region40: #{tpu_custom_call.1} parent=35 // pred_fallthru
          _
      $region36: #{tpu_custom_call.1} parent=5 // pred_fallthru
        _
    $region6: #{tpu_custom_call.1} parent=1 // loop_footer
      %s17 = sadd.s32 1, %s13
    $region7: #{tpu_custom_call.1} parent=1 // loop_footer_branch
      %12 = sbr.rel target = $region3
    $region8: #{tpu_custom_call.1} parent=1 // loop_exit
      _
    %214 = vsyncpa [#allocation3], 1
    %s215 = scalar_lea.sflag [#allocation3], 1
    %216 = vsyncpa %s215, 1
    %217 = vsyncpa [#allocation4], 1
    %s218 = scalar_lea.sflag [#allocation4], 1
    %219 = vsyncpa %s218, 1

</llo_original>
